<compile_context>
chip_gen: v7x
topology: tpu7x:2x2x1
jax: 0.10.0
libtpu: 0.0.40
codegen_flags: <defaults>
</compile_context>

<pallas_src>
import functools

import jax
import jax.numpy as jnp
from jax.experimental import pallas as pl
from jax.experimental.pallas import tpu as pltpu


# ---------------------------------------------------------------------------
# Kernels
# ---------------------------------------------------------------------------
def _conv1x1_kernel(x_ref, w_ref, b_ref, o_ref, *, use_bf16):
    # x_ref: (1, C1, ts)  w_ref: (C2, C1)  b_ref: (C2, 1)  o_ref: (1, C2, ts)
    x = x_ref[0]
    w = w_ref[...]
    if use_bf16:
        x = x.astype(jnp.bfloat16)
        w = w.astype(jnp.bfloat16)
    h = jnp.dot(w, x, preferred_element_type=jnp.float32) + b_ref[...]
    o_ref[0] = h.astype(o_ref.dtype)


def _conv1x1_sum_kernel(x_ref, y_ref, w_ref, b_ref, o_ref, *, use_bf16):
    # o = (W @ x + b) + y   (residual add fused)
    x = x_ref[0]
    w = w_ref[...]
    if use_bf16:
        x = x.astype(jnp.bfloat16)
        w = w.astype(jnp.bfloat16)
    h = jnp.dot(w, x, preferred_element_type=jnp.float32) + b_ref[...]
    o_ref[0] = (h + y_ref[0].astype(jnp.float32)).astype(o_ref.dtype)


def _conv1x1_cat_kernel(x_ref, y_ref, w_ref, b_ref, o_ref, *, c2, use_bf16):
    # Fused concat: o[:c2] = W @ x + b ; o[c2:] = y   (requires c2 % 8 == 0 for
    # sublane-aligned, unmasked stores).
    x = x_ref[0]
    w = w_ref[...]
    if use_bf16:
        x = x.astype(jnp.bfloat16)
        w = w.astype(jnp.bfloat16)
    h = jnp.dot(w, x, preferred_element_type=jnp.float32) + b_ref[...]
    o_ref[0, :c2, :] = h.astype(o_ref.dtype)
    o_ref[0, c2:, :] = y_ref[0].astype(o_ref.dtype)


# ---------------------------------------------------------------------------
# Tiling helpers
# ---------------------------------------------------------------------------
def _vmem_capacity_bytes():
    try:
        return int(pltpu.get_tpu_info().vmem_capacity_bytes)
    except Exception:
        return 64 * 1024 * 1024  # conservative: v7x per-TC VMEM


def _pick_spatial_tile(hw, n_batch, bytes_per_col, fixed_bytes, vmem_budget):
    """Largest lane-dense (multiple of 128) spatial tile whose double-buffered
    streaming footprint (plus the resident weight/bias) fits the budget, capped
    so the parallel grid has >= ~4 steps (keeps both v7x TensorCores busy)."""
    if hw < 128:
        return hw                                   # full-extent block is legal
    per_col = max(2 * bytes_per_col, 1)             # x/y/out tiles, double-buffered
    avail = max(vmem_budget - fixed_bytes, per_col * 128)
    target = max(128, (avail // per_col) // 128 * 128)
    ts_cap = max(128, (hw // 128) * 128)             # 128-multiple; partial last block OK
    ts = min(target, ts_cap)
    # Megacore (v7x): make sure there are enough parallel grid steps.
    while ts > 128 and n_batch * pl.cdiv(hw, ts) < 4:
        ts -= 128
    return ts


# ---------------------------------------------------------------------------
# Wrapper
# ---------------------------------------------------------------------------
def combine_pallas(x_nchw, y_nchw, weight, bias, method="cat"):
    """Combine module forward.

    x_nchw: (N, C1, H, W)   y_nchw: (N, Cy, H, W)
    weight: (C2, C1) or (C2, C1, 1, 1)   bias: (C2,)
    Returns NCHW output: (N, C2+Cy, H, W) for 'cat', (N, C2, H, W) for 'sum'.
    """
    N, C1, H, W = x_nchw.shape
    Ny, Cy, Hy, Wy = y_nchw.shape
    assert (N, H, W) == (Ny, Hy, Wy), "x and y must share batch/spatial dims"
    if weight.ndim == 4:  # accept the raw 1x1 conv kernel
        weight = weight.reshape(weight.shape[0], weight.shape[1])
    C2 = weight.shape[0]
    assert weight.shape == (C2, C1)
    HW = H * W

    out_dtype = x_nchw.dtype
    itemsize = jnp.dtype(out_dtype).itemsize

    # Free reshapes (NCHW is contiguous with H*W innermost).
    x_flat = x_nchw.reshape(N, C1, HW)
    b_col = bias.reshape(C2, 1)

    # bf16 MXU operands (f32 accumulate) keep large-channel configs memory-bound,
    # especially on v5e's f32 MXU.
    use_bf16 = bool(out_dtype == jnp.float32 and C1 >= 256 and C2 >= 256)

    fuse_cat = (method == "cat" and C2 % 8 == 0)

    if method == "cat":
        stream_cols = (C1 + Cy + C2 + Cy) if fuse_cat else (C1 + C2)
    elif method == "sum":
        assert Cy == C2, "'sum' requires y to have dim2 channels"
        stream_cols = C1 + 2 * C2
    else:
        raise ValueError(f"Method {method} not recognized.")

    # Double-buffered weight + bias footprint (not proportional to the tile).
    fixed_bytes = 2 * (C2 * C1 + C2) * itemsize
    capacity = _vmem_capacity_bytes()
    # Larger streaming budget on 128 MiB parts (v5e/v6e), conservative on v7x.
    budget = 20 * 1024 * 1024 if capacity >= 100 * 1024 * 1024 else 8 * 1024 * 1024

    ts = _pick_spatial_tile(HW, N, stream_cols * itemsize, fixed_bytes, budget)
    grid = (N, pl.cdiv(HW, ts))

    # Explicit scoped-VMEM limit: streaming tiles + resident weight/bias + slack.
    vmem_limit = 2 * ts * stream_cols * itemsize + fixed_bytes + 2 * 1024 * 1024
    vmem_limit = int(min(max(vmem_limit, 4 * 1024 * 1024), int(capacity * 0.9)))

    cparams = pltpu.CompilerParams(
        dimension_semantics=("parallel", "parallel"),
        vmem_limit_bytes=vmem_limit,
    )

    x_spec = pl.BlockSpec((1, C1, ts), lambda n, s: (n, 0, s))
    w_spec = pl.BlockSpec((C2, C1), lambda n, s: (0, 0))
    b_spec = pl.BlockSpec((C2, 1), lambda n, s: (0, 0))

    if method == "sum":
        y_flat = y_nchw.reshape(N, C2, HW)
        y_spec = pl.BlockSpec((1, C2, ts), lambda n, s: (n, 0, s))
        o_spec = pl.BlockSpec((1, C2, ts), lambda n, s: (n, 0, s))
        out_flat = pl.pallas_call(
            functools.partial(_conv1x1_sum_kernel, use_bf16=use_bf16),
            out_shape=jax.ShapeDtypeStruct((N, C2, HW), out_dtype),
            grid_spec=pltpu.PrefetchScalarGridSpec(
                num_scalar_prefetch=0,
                grid=grid,
                in_specs=[x_spec, y_spec, w_spec, b_spec],
                out_specs=o_spec,
            ),
            compiler_params=cparams,
        )(x_flat, y_flat, weight, b_col)
        return out_flat.reshape(N, C2, H, W)

    if fuse_cat:
        # Concat fused into the kernel: single (N, C2+Cy, HW) output, y streams
        # through VMEM exactly once, h is never re-read from HBM.
        Cout = C2 + Cy
        y_flat = y_nchw.reshape(N, Cy, HW)
        y_spec = pl.BlockSpec((1, Cy, ts), lambda n, s: (n, 0, s))
        o_spec = pl.BlockSpec((1, Cout, ts), lambda n, s: (n, 0, s))
        out_flat = pl.pallas_call(
            functools.partial(_conv1x1_cat_kernel, c2=C2, use_bf16=use_bf16),
            out_shape=jax.ShapeDtypeStruct((N, Cout, HW), out_dtype),
            grid_spec=pltpu.PrefetchScalarGridSpec(
                num_scalar_prefetch=0,
                grid=grid,
                in_specs=[x_spec, y_spec, w_spec, b_spec],
                out_specs=o_spec,
            ),
            compiler_params=cparams,
        )(x_flat, y_flat, weight, b_col)
        return out_flat.reshape(N, Cout, H, W)

    # 'cat' fallback (C2 % 8 != 0): an unaligned channel split inside the kernel
    # would force masked sublane stores, so emit h only and let XLA do the
    # contiguous channel-block concat.
    h_flat = pl.pallas_call(
        functools.partial(_conv1x1_kernel, use_bf16=use_bf16),
        out_shape=jax.ShapeDtypeStruct((N, C2, HW), out_dtype),
        grid_spec=pltpu.PrefetchScalarGridSpec(
            num_scalar_prefetch=0,
            grid=grid,
            in_specs=[x_spec, w_spec, b_spec],
            out_specs=pl.BlockSpec((1, C2, ts), lambda n, s: (n, 0, s)),
        ),
        compiler_params=cparams,
    )(x_flat, weight, b_col)
    h = h_flat.reshape(N, C2, H, W)
    return jnp.concatenate([h, y_nchw.astype(out_dtype)], axis=1)


# ---------------------------------------------------------------------------
# Pure-JAX reference of the PyTorch forward
# ---------------------------------------------------------------------------
def _reference(x_nchw, y_nchw, weight, bias, method):
    h = jnp.einsum("oc,nchw->nohw", weight, x_nchw) + bias[None, :, None, None]
    if method == "cat":
        return jnp.concatenate([h, y_nchw.astype(h.dtype)], axis=1)
    return h + y_nchw


if __name__ == "__main__":
    key = jax.random.PRNGKey(0)

    # (method, N, C1, C2, Cy, H, W)
    configs = [
        ("cat", 2, 4, 8, 8, 16, 16),   # fused-concat path (C2 % 8 == 0)
        ("cat", 2, 4, 4, 4, 16, 16),   # fallback path (C2 % 8 != 0)
        ("sum", 2, 4, 8, 8, 16, 16),   # fused residual add
        ("cat", 2, 4, 8, 8, 12, 12),   # HW not a multiple of 128 (partial block)
    ]

    ok = True
    for cfg_idx, (method, N, C1, C2, Cy, Hs, Ws) in enumerate(configs):
        key, k_x, k_y, k_w, k_b = jax.random.split(key, 5)
        x = jax.random.normal(k_x, (N, C1, Hs, Ws), dtype=jnp.float32)
        y = jax.random.normal(k_y, (N, Cy, Hs, Ws), dtype=jnp.float32)
        weight = jax.random.normal(k_w, (C2, C1), dtype=jnp.float32) * 0.1
        bias = jax.random.normal(k_b, (C2,), dtype=jnp.float32) * 0.01

        out = combine_pallas(x, y, weight, bias, method=method)
        out = jax.block_until_ready(out)
        ref = _reference(x, y, weight, bias, method)
        if out.shape != ref.shape or not jnp.allclose(out, ref, atol=1e-5, rtol=1e-5):
            ok = False
            print(f"MISMATCH cfg#{cfg_idx} method={method}: "
                  f"shapes {out.shape} vs {ref.shape}, "
                  f"max err {jnp.max(jnp.abs(out - ref))}")

    if ok:
        print("KERNEL_OK")
</pallas_src>

<mosaic_0001>
module attributes {stable_mosaic.version = 11 : i64} {
  func.func @_conv1x1_cat_kernel(%arg0: i32, %arg1: i32, %arg2: memref<1x4x128xf32, #tpu.memory_space<vmem>>, %arg3: memref<1x8x128xf32, #tpu.memory_space<vmem>>, %arg4: memref<8x4xf32, #tpu.memory_space<vmem>>, %arg5: memref<8x1xf32, #tpu.memory_space<vmem>>, %arg6: memref<1x16x128xf32, #tpu.memory_space<vmem>>) attributes {dimension_semantics = [#tpu.dimension_semantics<parallel>, #tpu.dimension_semantics<parallel>], iteration_bounds = array<i64: 2, 2>, scalar_prefetch = 0 : i64, scratch_operands = 0 : i64, tpu.core_type = #tpu.core_type<tc>, window_params = [{transform_indices = @transform_0, window_bounds = array<i64: 1, 4, 128>}, {transform_indices = @transform_1, window_bounds = array<i64: 1, 8, 128>}, {pipeline_mode = #tpu.pipeline_mode<synchronous>, transform_indices = @transform_2, window_bounds = array<i64: 8, 4>}, {pipeline_mode = #tpu.pipeline_mode<synchronous>, transform_indices = @transform_3, window_bounds = array<i64: 8, 1>}, {transform_indices = @transform_4, window_bounds = array<i64: 1, 16, 128>}]} {
    %c0 = arith.constant 0 : index
    %c0_0 = arith.constant 0 : index
    %c0_1 = arith.constant 0 : index
    %0 = vector.load %arg2[%c0, %c0_0, %c0_1] : memref<1x4x128xf32, #tpu.memory_space<vmem>>, vector<1x4x128xf32>
    %1 = vector.shape_cast %0 : vector<1x4x128xf32> to vector<4x128xf32>
    %c0_2 = arith.constant 0 : index
    %c0_3 = arith.constant 0 : index
    %2 = vector.load %arg4[%c0_2, %c0_3] : memref<8x4xf32, #tpu.memory_space<vmem>>, vector<8x4xf32>
    %cst = arith.constant dense<0.000000e+00> : vector<8x128xf32>
    %3 = tpu.matmul %2, %1, %cst {dimension_numbers = #tpu.dot_dimension_numbers<[1], [0], [0], [1], [0, 0, 1, 1], [], []>} : vector<8x4xf32>, vector<4x128xf32>, vector<8x128xf32> -> vector<8x128xf32>
    %c0_4 = arith.constant 0 : index
    %c0_5 = arith.constant 0 : index
    %4 = vector.load %arg5[%c0_4, %c0_5] : memref<8x1xf32, #tpu.memory_space<vmem>>, vector<8x1xf32>
    %5 = vector.broadcast %4 : vector<8x1xf32> to vector<8x128xf32>
    %6 = arith.addf %3, %5 : vector<8x128xf32>
    %c0_6 = arith.constant 0 : index
    %c0_7 = arith.constant 0 : index
    %c0_8 = arith.constant 0 : index
    %7 = vector.load %arg6[%c0_6, %c0_7, %c0_8] : memref<1x16x128xf32, #tpu.memory_space<vmem>>, vector<1x8x128xf32>
    %8 = vector.shape_cast %7 : vector<1x8x128xf32> to vector<8x128xf32>
    %9 = vector.shape_cast %6 : vector<8x128xf32> to vector<1x8x128xf32>
    tpu.vector_store %arg6[%c0_6, %c0_7, %c0_8], %9 {strides = array<i32>} : memref<1x16x128xf32, #tpu.memory_space<vmem>>, vector<1x8x128xf32>,
    %c0_9 = arith.constant 0 : index
    %c0_10 = arith.constant 0 : index
    %c0_11 = arith.constant 0 : index
    %10 = vector.load %arg3[%c0_9, %c0_10, %c0_11] : memref<1x8x128xf32, #tpu.memory_space<vmem>>, vector<1x8x128xf32>
    %11 = vector.shape_cast %10 : vector<1x8x128xf32> to vector<8x128xf32>
    %c0_12 = arith.constant 0 : index
    %c8 = arith.constant 8 : index
    %c0_13 = arith.constant 0 : index
    %12 = vector.load %arg6[%c0_12, %c8, %c0_13] : memref<1x16x128xf32, #tpu.memory_space<vmem>>, vector<1x8x128xf32>
    %13 = vector.shape_cast %12 : vector<1x8x128xf32> to vector<8x128xf32>
    %14 = vector.shape_cast %11 : vector<8x128xf32> to vector<1x8x128xf32>
    tpu.vector_store %arg6[%c0_12, %c8, %c0_13], %14 {strides = array<i32>} : memref<1x16x128xf32, #tpu.memory_space<vmem>>, vector<1x8x128xf32>,
    return
  }
  func.func @transform_0(%arg0: i32, %arg1: i32) -> (i32, i32, i32) {
    %c0_i32 = arith.constant 0 : i32
    %c0_i32_0 = arith.constant 0 : i32
    return %arg0, %c0_i32, %arg1 : i32, i32, i32
  }
  func.func @transform_1(%arg0: i32, %arg1: i32) -> (i32, i32, i32) {
    %c0_i32 = arith.constant 0 : i32
    %c0_i32_0 = arith.constant 0 : i32
    return %arg0, %c0_i32, %arg1 : i32, i32, i32
  }
  func.func @transform_2(%arg0: i32, %arg1: i32) -> (i32, i32) {
    %c0_i32 = arith.constant 0 : i32
    %c0_i32_0 = arith.constant 0 : i32
    %c0_i32_1 = arith.constant 0 : i32
    return %c0_i32, %c0_i32_0 : i32, i32
  }
  func.func @transform_3(%arg0: i32, %arg1: i32) -> (i32, i32) {
    %c0_i32 = arith.constant 0 : i32
    %c0_i32_0 = arith.constant 0 : i32
    %c0_i32_1 = arith.constant 0 : i32
    return %c0_i32, %c0_i32_0 : i32, i32
  }
  func.func @transform_4(%arg0: i32, %arg1: i32) -> (i32, i32, i32) {
    %c0_i32 = arith.constant 0 : i32
    %c0_i32_0 = arith.constant 0 : i32
    return %arg0, %c0_i32, %arg1 : i32, i32, i32
  }
}

</mosaic_0001>

<llo_original>
// kernel: tpu_custom_call.1
$region0: #{tpu_custom_call.1}
  #allocation0 [shape = 'u32[]', space=smem, size = 0x4, offset = 0x4, fixed_abs, tag = 'smem constant byte address 0x4 - core index']
  #allocation1 [shape = 'u32[144,128]{1,0:T(1,128)}', space=vmem, size = 0x12000, scoped, tag = 'internal scratch']
  %s0 = inlined_call_operand.vmem [shape: f32[2,4,256], index: 0, kind: input, shape index: {}]
  %s1 = inlined_call_operand.hbm [shape: f32[2,8,256], index: 1, kind: input, shape index: {}]
  %s2 = inlined_call_operand.vmem [shape: f32[8,4], index: 2, kind: input, shape index: {}]
  %s3 = inlined_call_operand.vmem [shape: f32[8,1], index: 3, kind: input, shape index: {}]
  %s4 = inlined_call_operand.hbm [shape: f32[2,16,256], index: 4, kind: output, shape index: {}]
  %s5 = sld [smem:[#allocation0]]
  $region53: #{tpu_custom_call.1} parent=0
    _
  %s7 = ssub.s32 1, %s5
  %s8 = scalar_select 0, %s7, %s5
  $region1: #{tpu_custom_call.1} parent=0
    #allocation2 [shape = 'u8[8192]{0}', space=vmem, size = 0x2000, scoped, tag = 'input window, operand 1']
    #allocation3 [shape = 's32[2]{0}', space=sflag, size = 0x8, scoped, tag = 'scoped memory for tpu_custom_call.1']
    #allocation4 [shape = 's32[2]{0}', space=sflag, size = 0x8, scoped, tag = 'scoped memory for tpu_custom_call.1']
    #allocation5 [shape = 'u8[16384]{0}', space=vmem, size = 0x4000, scoped, tag = 'output window, operand 0']
    %9 = vsyncpa [#allocation3], 0
    %s10 = scalar_lea.sflag [#allocation3], 1
    %11 = vsyncpa %s10, 0
    %12 = vsyncpa [#allocation4], 0
    %s13 = scalar_lea.sflag [#allocation4], 1
    %14 = vsyncpa %s13, 0
    loop: start=0, step=1, limit=6
    $region2: #{tpu_custom_call.1} parent=1 // loop_pre_header
      _
    $region3: #{tpu_custom_call.1} parent=1 // loop_header
      %s16 = sphi 0, %s20
      %p17 = scmp.ge.s32.totalorder %s16, 6
      %s23 = sphi 0, %s35
      %s24 = sphi 0, %s31
      %s25 = sphi 0, %s23
      %s26 = sphi 0, %s24
      %s27 = sphi 0, %s25
      %s28 = sphi 0, %s26
      %s40 = sphi 0, %s42
      %s43 = sphi 0, %s40
      %s44 = sphi 0, %s43
      %s60 = sphi 0, %s44
      %s68 = sphi 0, %s70
      %s71 = sphi 0, %s68
      %s72 = sphi 0, %s71
      %s88 = sphi 0, %s72
      %s92 = sphi 0, %s92
      %s94 = sphi 0, %s92
      %s95 = sphi 0, %s94
      %s109 = sphi 0, %s95
      %s113 = sphi 0, %s113
      %s115 = sphi 0, %s113
      %s116 = sphi 0, %s115
      %s130 = sphi 0, %s116
      %s138 = sphi 0, %s140
      %s141 = sphi 0, %s138
      %s142 = sphi 0, %s141
      %s158 = sphi 0, %s142
    $region4: #{tpu_custom_call.1} parent=1 // loop_header_branch
      %19 = sbr.rel (%p17) target = $region8
    $region5: #{tpu_custom_call.1} parent=1 // loop_body
      %s21 = ssub.s32 %s16, 1
      %s22 = ssub.s32 %s16, 2
      %s29 = sadd.s32 1, %s24
      %p30 = scmp.ge.s32.totalorder %s29, 2
      %s31 = scalar_select %p30, 0, %s29
      %s32 = sadd.s32 1, %s23
      %s33 = scalar_select %p30, %s32, %s23
      %p34 = scmp.ge.s32.totalorder %s33, 2
      %s35 = scalar_select %p34, 0, %s33
      %s36 = ssub.s32 %s23, %s35
      %s37 = ssub.s32 %s24, %s31
      %s38 = sor.u32 %s36, %s37
      %p39 = scmp.eq.s32.totalorder %s38, 0
      %s41 = sadd.s32 %s40, 1
      %s42 = scalar_select %p39, %s40, %s41
      %p45 = pneg %p39
      %p46 = scmp.eq.s32.totalorder %s16, 3
      %p47 = por %p45, %p46
      %p48 = scmp.ne.s32.totalorder %s40, %s43
      %p49 = scmp.eq.s32.totalorder %s16, 0
      %p50 = por %p48, %p49
      %p51 = scmp.ne.s32.totalorder %s40, %s43
      %p52 = scmp.eq.s32.totalorder %s21, 3
      %p53 = por %p51, %p52
      %p54 = scmp.ne.s32.totalorder %s43, %s44
      %p55 = scmp.eq.s32.totalorder %s21, 0
      %p56 = por %p54, %p55
      %p57 = scmp.ne.s32.totalorder %s43, %s44
      %p58 = scmp.eq.s32.totalorder %s22, 3
      %p59 = por %p57, %p58
      %p61 = scmp.ne.s32.totalorder %s44, %s60
      %p62 = scmp.eq.s32.totalorder %s22, 0
      %p63 = por %p61, %p62
      %s64 = ssub.s32 %s23, %s35
      %s65 = ssub.s32 %s24, %s31
      %s66 = sor.u32 %s64, %s65
      %p67 = scmp.eq.s32.totalorder %s66, 0
      %s69 = sadd.s32 %s68, 1
      %s70 = scalar_select %p67, %s68, %s69
      %p73 = pneg %p67
      %p74 = scmp.eq.s32.totalorder %s16, 3
      %p75 = por %p73, %p74
      %p76 = scmp.ne.s32.totalorder %s68, %s71
      %p77 = scmp.eq.s32.totalorder %s16, 0
      %p78 = por %p76, %p77
      %p79 = scmp.ne.s32.totalorder %s68, %s71
      %p80 = scmp.eq.s32.totalorder %s21, 3
      %p81 = por %p79, %p80
      %p82 = scmp.ne.s32.totalorder %s71, %s72
      %p83 = scmp.eq.s32.totalorder %s21, 0
      %p84 = por %p82, %p83
      %p85 = scmp.ne.s32.totalorder %s71, %s72
      %p86 = scmp.eq.s32.totalorder %s22, 3
      %p87 = por %p85, %p86
      %p89 = scmp.ne.s32.totalorder %s72, %s88
      %p90 = scmp.eq.s32.totalorder %s22, 0
      %p91 = por %p89, %p90
      %s93 = sadd.s32 %s92, 1
      %p96 = scmp.eq.s32.totalorder %s16, 3
      %p97 = scmp.ne.s32.totalorder %s92, %s94
      %p98 = scmp.eq.s32.totalorder %s16, 0
      %p99 = por %p97, %p98
      %p100 = scmp.ne.s32.totalorder %s92, %s94
      %p101 = scmp.eq.s32.totalorder %s21, 3
      %p102 = por %p100, %p101
      %p103 = scmp.ne.s32.totalorder %s94, %s95
      %p104 = scmp.eq.s32.totalorder %s21, 0
      %p105 = por %p103, %p104
      %p106 = scmp.ne.s32.totalorder %s94, %s95
      %p107 = scmp.eq.s32.totalorder %s22, 3
      %p108 = por %p106, %p107
      %p110 = scmp.ne.s32.totalorder %s95, %s109
      %p111 = scmp.eq.s32.totalorder %s22, 0
      %p112 = por %p110, %p111
      %s114 = sadd.s32 %s113, 1
      %p117 = scmp.eq.s32.totalorder %s16, 3
      %p118 = scmp.ne.s32.totalorder %s113, %s115
      %p119 = scmp.eq.s32.totalorder %s16, 0
      %p120 = por %p118, %p119
      %p121 = scmp.ne.s32.totalorder %s113, %s115
      %p122 = scmp.eq.s32.totalorder %s21, 3
      %p123 = por %p121, %p122
      %p124 = scmp.ne.s32.totalorder %s115, %s116
      %p125 = scmp.eq.s32.totalorder %s21, 0
      %p126 = por %p124, %p125
      %p127 = scmp.ne.s32.totalorder %s115, %s116
      %p128 = scmp.eq.s32.totalorder %s22, 3
      %p129 = por %p127, %p128
      %p131 = scmp.ne.s32.totalorder %s116, %s130
      %p132 = scmp.eq.s32.totalorder %s22, 0
      %p133 = por %p131, %p132
      %s134 = ssub.s32 %s23, %s35
      %s135 = ssub.s32 %s24, %s31
      %s136 = sor.u32 %s134, %s135
      %p137 = scmp.eq.s32.totalorder %s136, 0
      %s139 = sadd.s32 %s138, 1
      %s140 = scalar_select %p137, %s138, %s139
      %p143 = pneg %p137
      %p144 = scmp.eq.s32.totalorder %s16, 3
      %p145 = por %p143, %p144
      %p146 = scmp.ne.s32.totalorder %s138, %s141
      %p147 = scmp.eq.s32.totalorder %s16, 0
      %p148 = por %p146, %p147
      %p149 = scmp.ne.s32.totalorder %s138, %s141
      %p150 = scmp.eq.s32.totalorder %s21, 3
      %p151 = por %p149, %p150
      %p152 = scmp.ne.s32.totalorder %s141, %s142
      %p153 = scmp.eq.s32.totalorder %s21, 0
      %p154 = por %p152, %p153
      %p155 = scmp.ne.s32.totalorder %s141, %s142
      %p156 = scmp.eq.s32.totalorder %s22, 3
      %p157 = por %p155, %p156
      %p159 = scmp.ne.s32.totalorder %s142, %s158
      %p160 = scmp.eq.s32.totalorder %s22, 0
      %p161 = por %p159, %p160
      %p162 = scmp.le.s32.totalorder 1, %s16
      %p163 = scmp.lt.s32.totalorder %s16, 5
      %p164 = pnand %p162, %p163
      %p165 = pneg %p164
      // Predicated region
      $region9: #{tpu_custom_call.1} parent=5 // pred_check
        _
      $region10: #{tpu_custom_call.1} parent=5 // pred_check_branch
        %167 = sbr.rel (%p164) target = $region12
      $region11: #{tpu_custom_call.1} parent=5 // pred_region
        %s168 = ssub.s32 %s16, 1
        // Predicated region
        $region13: #{tpu_custom_call.1} parent=11 // pred_check
          %p169 = pneg %p105
        $region14: #{tpu_custom_call.1} parent=11 // pred_check_branch
          %171 = sbr.rel (%p169) target = $region16
        $region15: #{tpu_custom_call.1} parent=11 // pred_region
          _
        $region16: #{tpu_custom_call.1} parent=11 // pred_fallthru
          _
        // Predicated region
        $region17: #{tpu_custom_call.1} parent=11 // pred_check
          %p172 = pneg %p126
        $region18: #{tpu_custom_call.1} parent=11 // pred_check_branch
          %174 = sbr.rel (%p172) target = $region20
        $region19: #{tpu_custom_call.1} parent=11 // pred_region
          _
        $region20: #{tpu_custom_call.1} parent=11 // pred_fallthru
          _
      $region12: #{tpu_custom_call.1} parent=5 // pred_fallthru
        _
      %p175 = scmp.lt.s32.totalorder %s16, 4
      // Predicated region
      $region21: #{tpu_custom_call.1} parent=5 // pred_check
        %p176 = pneg %p175
      $region22: #{tpu_custom_call.1} parent=5 // pred_check_branch
        %178 = sbr.rel (%p176) target = $region24
      $region23: #{tpu_custom_call.1} parent=5 // pred_region
        // Predicated region
        $region25: #{tpu_custom_call.1} parent=23 // pred_check
          %p179 = pneg %p50
        $region26: #{tpu_custom_call.1} parent=23 // pred_check_branch
          %181 = sbr.rel (%p179) target = $region28
        $region27: #{tpu_custom_call.1} parent=23 // pred_region
          %p182 = scmp.lt.s32.totalorder %s23, 1
          %s183 = scalar_select %p182, %s23, 1
          %p184 = scmp.lt.s32.totalorder %s24, 1
          %s185 = scalar_select %p184, %s24, 1
          %s186 = smul.addr %s183, 2
          %s187 = sadd.s32 %s185, %s186
          %s188 = smul.addr %s187, 4
          %s189 = scalar_lea.vmem %s0, %s188
        $region28: #{tpu_custom_call.1} parent=23 // pred_fallthru
          _
        // Predicated region
        $region29: #{tpu_custom_call.1} parent=23 // pred_check
          %p190 = pneg %p78
        $region30: #{tpu_custom_call.1} parent=23 // pred_check_branch
          %192 = sbr.rel (%p190) target = $region32
        $region31: #{tpu_custom_call.1} parent=23 // pred_region
          %s193 = sand.u32 %s68, 1
          %s194 = scalar_lea.sflag [#allocation3], %s193
          %s195 = sand.u32 %s68, 1
          %s196 = smul.addr %s195, 8
          %s197 = scalar_lea.vmem [#allocation2], %s196
          %s199 = ssub.s32 128, 128
          %200 = vsyncadd %s194, %s199
          %s201 = smul.addr %s23, 2
          %s202 = sadd.s32 %s24, %s201
          %s203 = smul.addr %s202, 128
          %s204 = scalar_lea.hbm %s1, %s203
          %s206 = sshll.u32 %s197, 4
          %s207 = int_to_ptr.vmem [resolvable:$true] %s206
          %209 = dma.hbm_to_vmem [thread:$0]  %s204, 128, %s207, %s194
        $region32: #{tpu_custom_call.1} parent=23 // pred_fallthru
          _
      $region24: #{tpu_custom_call.1} parent=5 // pred_fallthru
        _
      %p210 = scmp.le.s32.totalorder 1, %s16
      %p211 = scmp.lt.s32.totalorder %s16, 5
      %p212 = pnand %p210, %p211
      %p213 = pneg %p212
      // Predicated region
      $region33: #{tpu_custom_call.1} parent=5 // pred_check
        _
      $region34: #{tpu_custom_call.1} parent=5 // pred_check_branch
        %215 = sbr.rel (%p212) target = $region36
      $region35: #{tpu_custom_call.1} parent=5 // pred_region
        %s216 = ssub.s32 %s16, 1
        %s217 = sand.u32 %s71, 1
        %s218 = scalar_lea.sflag [#allocation3], %s217
        %s219 = sand.u32 %s71, 1
        %s220 = smul.addr %s219, 8
        %s221 = scalar_lea.vmem [#allocation2], %s220
        // Predicated region
        $region37: #{tpu_custom_call.1} parent=35 // pred_check
          %p222 = pneg %p84
        $region38: #{tpu_custom_call.1} parent=35 // pred_check_branch
          %224 = sbr.rel (%p222) target = $region40
        $region39: #{tpu_custom_call.1} parent=35 // pred_region
          %225 = dma.done %s218, 128
        $region40: #{tpu_custom_call.1} parent=35 // pred_fallthru
          _
        %p226 = scmp.lt.s32.totalorder %s25, 1
        %s227 = scalar_select %p226, %s25, 1
        %p228 = scmp.lt.s32.totalorder %s26, 1
        %s229 = scalar_select %p228, %s26, 1
        %s230 = smul.addr %s227, 2
        %s231 = sadd.s32 %s229, %s230
        %s232 = smul.addr %s231, 4
        %s233 = scalar_lea.vmem %s0, %s232
        %p234 = pneg %p56
        %p235 = pneg %p53
        %s236 = sand.u32 %s71, 1
        %s237 = scalar_lea.sflag [#allocation3], %s236
        %s238 = sand.u32 %s71, 1
        %s239 = smul.addr %s238, 8
        %s240 = scalar_lea.vmem [#allocation2], %s239
        %p241 = pneg %p84
        %p242 = pneg %p81
        %p243 = pneg %p105
        %p244 = pneg %p102
        %p245 = pneg %p126
        %p246 = pneg %p123
        %p247 = pneg %p154
        %p248 = pneg %p151
        %s249 = sand.u32 %s141, 1
        %s250 = scalar_lea.sflag [#allocation4], %s249
        %s251 = sand.u32 %s141, 1
        %s252 = smul.addr %s251, 16
        %s253 = scalar_lea.vmem [#allocation5], %s252
        %p254 = scmp.lt.s32.totalorder %s25, 1
        %s255 = scalar_select %p254, %s25, 1
        %p256 = scmp.lt.s32.totalorder %s26, 1
        %s257 = scalar_select %p256, %s26, 1
        %s258 = smul.addr %s255, 2
        %s259 = sadd.s32 %s257, %s258
        %s260 = smul.addr %s259, 4
        %s261 = scalar_lea.vmem %s0, %s260
        %v262 = vld [vmem:[%s261] sm:$0xf]
        %v263 = vld [vmem:[%s2] sm:$0xff]
        %v264 = vld [vmem:[%s3] sm:$0xff]
        %266 = vset.pattern.permute.xlu0 0
        %267 = vperm.xlu0 %266, %v264
        %v268 = vpop.permute.xlu0 %267
        %vm270 = vcmask 31744
        %v272 = vsel %vm270, %v263, 0
        %vm274 = vcmask 1043456
        %v276 = vsel %vm274, %v262, 0
        %278 = vmatprep.subr.mxu0 0.0
        %279 = vmatpush1.msra.mxu0 %v276
        %280 = vmatprep.subr.mxu0 0.0
        %281 = vmatpush1.msra.mxu0 0.0
        %282 = vmatprep.subr.mxu0 0.0
        %283 = vmatpush1.msra.mxu0 0.0
        %284 = vmatprep.subr.mxu0 0.0
        %285 = vmatpush1.msra.mxu0 0.0
        %286 = vmatprep.subr.mxu0 0.0
        %287 = vmatpush1.msra.mxu0 0.0
        %288 = vmatprep.subr.mxu0 0.0
        %289 = vmatpush1.msra.mxu0 0.0
        %290 = vmatprep.subr.mxu0 0.0
        %291 = vmatpush1.msra.mxu0 0.0
        %292 = vmatprep.subr.mxu0 0.0
        %293 = vmatpush1.msra.mxu0 0.0
        %294 = vmatprep.subr.mxu0 0.0
        %295 = vmatpush1.msra.mxu0 0.0
        %296 = vmatprep.subr.mxu0 0.0
        %297 = vmatpush1.msra.mxu0 0.0
        %298 = vmatprep.subr.mxu0 0.0
        %299 = vmatpush1.msra.mxu0 0.0
        %300 = vmatprep.subr.mxu0 0.0
        %301 = vmatpush1.msra.mxu0 0.0
        %302 = vmatprep.subr.mxu0 0.0
        %303 = vmatpush1.msra.mxu0 0.0
        %304 = vmatprep.subr.mxu0 0.0
        %305 = vmatpush1.msra.mxu0 0.0
        %306 = vmatprep.subr.mxu0 0.0
        %307 = vmatpush1.msra.mxu0 0.0
        %308 = vmatprep.subr.mxu0 0.0
        %309 = vmatpush1.msra.mxu0 0.0
        %310 = vmatprep.subr.mxu0 0.0
        %311 = vmatpush1.msra.mxu0 0.0
        %312 = vmatprep.subr.mxu0 0.0
        %313 = vmatpush1.msra.mxu0 0.0
        %314 = vmatprep.subr.mxu0 0.0
        %315 = vmatpush1.msra.mxu0 0.0
        %316 = vmatprep.subr.mxu0 0.0
        %317 = vmatpush1.msra.mxu0 0.0
        %318 = vmatprep.subr.mxu0 0.0
        %319 = vmatpush1.msra.mxu0 0.0
        %320 = vmatprep.subr.mxu0 0.0
        %321 = vmatpush1.msra.mxu0 0.0
        %322 = vmatprep.subr.mxu0 0.0
        %323 = vmatpush1.msra.mxu0 0.0
        %324 = vmatprep.subr.mxu0 0.0
        %325 = vmatpush1.msra.mxu0 0.0
        %326 = vmatprep.subr.mxu0 0.0
        %327 = vmatpush1.msra.mxu0 0.0
        %328 = vmatprep.subr.mxu0 0.0
        %329 = vmatpush1.msra.mxu0 0.0
        %330 = vmatprep.subr.mxu0 0.0
        %331 = vmatpush1.msra.mxu0 0.0
        %332 = vmatprep.subr.mxu0 0.0
        %333 = vmatpush1.msra.mxu0 0.0
        %334 = vmatprep.subr.mxu0 0.0
        %335 = vmatpush1.msra.mxu0 0.0
        %336 = vmatprep.subr.mxu0 0.0
        %337 = vmatpush1.msra.mxu0 0.0
        %338 = vmatprep.subr.mxu0 0.0
        %339 = vmatpush1.msra.mxu0 0.0
        %340 = vmatprep.subr.mxu0 0.0
        %341 = vmatpush1.msra.mxu0 0.0
        %342 = vmatprep.mubr.f32.mxu0 0.0
        %343 = vmatmul.mubr.f32.gmra.mrb[0].mxu0 %v272
        %v344 = vpop.f32.mrb[0].mxu0
        %v345 = vadd.f32 %v268, %v344
        %v346 = vpop.f32.mrb[0].mxu0
        %347 = vdwg.mxu0
        %348 = vst [vmem:[%s253] sm:$0xff] %v345
        %v349 = vld [vmem:[%s221] sm:$0xff]
        %350 = vst [vmem:[%s253 + $0x8] sm:$0xff] %v349
        %s351 = sand.u32 %s141, 1
        %s352 = scalar_lea.sflag [#allocation4], %s351
        %s353 = sand.u32 %s141, 1
        %s354 = smul.addr %s353, 16
        %s355 = scalar_lea.vmem [#allocation5], %s354
        // Predicated region
        $region41: #{tpu_custom_call.1} parent=35 // pred_check
          %p356 = pneg %p151
        $region42: #{tpu_custom_call.1} parent=35 // pred_check_branch
          %358 = sbr.rel (%p356) target = $region44
        $region43: #{tpu_custom_call.1} parent=35 // pred_region
          %s360 = ssub.s32 256, 256
          %361 = vsyncadd %s352, %s360
          %s362 = smul.addr %s25, 4
          %s363 = sadd.s32 %s26, %s362
          %s364 = smul.addr %s363, 128
          %s365 = scalar_lea.hbm %s4, %s364
          %s366 = sshll.u32 %s355, 4
          %s367 = int_to_ptr.vmem [resolvable:$true] %s366
          %372 = dma.vmem_to_hbm [thread:$0]  %s367, 256, %s365, %s352, 128, 256, 8
        $region44: #{tpu_custom_call.1} parent=35 // pred_fallthru
          _
      $region36: #{tpu_custom_call.1} parent=5 // pred_fallthru
        _
      %p373 = scmp.le.s32.totalorder 2, %s16
      // Predicated region
      $region45: #{tpu_custom_call.1} parent=5 // pred_check
        %p374 = pneg %p373
      $region46: #{tpu_custom_call.1} parent=5 // pred_check_branch
        %376 = sbr.rel (%p374) target = $region48
      $region47: #{tpu_custom_call.1} parent=5 // pred_region
        %s377 = ssub.s32 %s16, 2
        // Predicated region
        $region49: #{tpu_custom_call.1} parent=47 // pred_check
          %p378 = pneg %p157
        $region50: #{tpu_custom_call.1} parent=47 // pred_check_branch
          %380 = sbr.rel (%p378) target = $region52
        $region51: #{tpu_custom_call.1} parent=47 // pred_region
          %s381 = sand.u32 %s142, 1
          %s382 = scalar_lea.sflag [#allocation4], %s381
          %s383 = sand.u32 %s142, 1
          %s384 = smul.addr %s383, 16
          %s385 = scalar_lea.vmem [#allocation5], %s384
          %386 = dma.done %s382, 256
        $region52: #{tpu_custom_call.1} parent=47 // pred_fallthru
          _
      $region48: #{tpu_custom_call.1} parent=5 // pred_fallthru
        _
    $region6: #{tpu_custom_call.1} parent=1 // loop_footer
      %s20 = sadd.s32 1, %s16
    $region7: #{tpu_custom_call.1} parent=1 // loop_footer_branch
      %15 = sbr.rel target = $region3
    $region8: #{tpu_custom_call.1} parent=1 // loop_exit
      _
    %387 = vsyncpa [#allocation3], 1
    %s388 = scalar_lea.sflag [#allocation3], 1
    %389 = vsyncpa %s388, 1
    %390 = vsyncpa [#allocation4], 1
    %s391 = scalar_lea.sflag [#allocation4], 1
    %392 = vsyncpa %s391, 1

</llo_original>
